<compile_context>
chip_gen: v5e
topology: v5e:2x2
jax: 0.10.0
libtpu: 0.0.40
codegen_flags: <defaults>
</compile_context>

<pallas_src>
import functools

import jax
import jax.numpy as jnp
import numpy as np
from jax.experimental import pallas as pl
from jax.experimental.pallas import tpu as pltpu

LANE = 128


def _round_up(n, m):
    return ((n + m - 1) // m) * m


# ------------------------------- Pallas kernel ------------------------------ #

def _resblock_kernel(x_ref, sb1_ref, w1_ref, bias_ref, w2_ref, out_ref, *,
                     channel_equal):
    """Fused ResBlock: bn1+relu -> (bn2-folded) fc1+relu -> fc2(+shortcut) + residual."""
    # BN1 (folded, inference) + ReLU.  a1 is reused by the residual / shortcut branch.
    a1 = jnp.maximum(x_ref[...] * sb1_ref[0:1, :] + sb1_ref[1:2, :], 0.0)
    a1_bf = a1.astype(jnp.bfloat16)

    # fc1 with BN2 folded in (w1' = w1*s2, fb1' = fb1*s2 + b2), then ReLU.
    h = jnp.dot(a1_bf, w1_ref[...], preferred_element_type=jnp.float32) + bias_ref[0:1, :]
    a2 = jnp.maximum(h, 0.0).astype(jnp.bfloat16)

    if channel_equal:
        # fc2 + identity residual on relu(bn1(x)).
        out = (jnp.dot(a2, w2_ref[...], preferred_element_type=jnp.float32)
               + bias_ref[1:2, :] + a1)
    else:
        # fc2 and shortcut projection fused into one matmul:
        #   [a2 | a1] @ [w2 ; wsc] + (fb2 + bsc)
        lhs = jnp.concatenate([a2, a1_bf], axis=-1)
        out = (jnp.dot(lhs, w2_ref[...], preferred_element_type=jnp.float32)
               + bias_ref[1:2, :])

    out_ref[...] = out.astype(out_ref.dtype)


# --------------------------- one-time parameter prep ------------------------ #

def prepare_resblock_params(p, *, weight_dtype=jnp.bfloat16):
    """Pad/fold raw ResBlock params once; results stay device-resident."""
    fin, fout = p["w1"].shape
    channel_equal = "wsc" not in p
    fin_p, fout_p = _round_up(fin, LANE), _round_up(fout, LANE)

    def pad2(a, rows, cols, dtype=jnp.float32):
        a = jnp.asarray(a, jnp.float32)
        a = jnp.pad(a, ((0, rows - a.shape[0]), (0, cols - a.shape[1])))
        return a.astype(dtype)

    # Fold BN2 into fc1 (exact algebra): h*s2 + b2 == a1 @ (w1*s2) + (fb1*s2 + b2).
    w1_folded = p["w1"] * p["s2"][None, :]
    fb1_folded = p["fb1"] * p["s2"] + p["b2"]

    sb1 = pad2(jnp.stack([p["s1"], p["b1"]]), 2, fin_p)              # (2, fin_p) f32
    w1p = pad2(w1_folded, fin_p, fout_p, weight_dtype)               # (fin_p, fout_p) bf16

    if channel_equal:
        w2p = pad2(p["w2"], fout_p, fout_p, weight_dtype)            # (fout_p, fout_p)
        fb2_eff = p["fb2"]
    else:
        # Stack [w2 ; wsc] along K, matching the in-kernel [a2 | a1] concatenation.
        w2_blk = pad2(p["w2"], fout_p, fout_p)
        wsc_blk = pad2(p["wsc"], fin_p, fout_p)
        w2p = jnp.concatenate([w2_blk, wsc_blk], axis=0).astype(weight_dtype)
        fb2_eff = p["fb2"] + p["bsc"]

    bias = pad2(jnp.stack([fb1_folded, fb2_eff]), 2, fout_p)         # (2, fout_p) f32

    return {"sb1": sb1, "w1": w1p, "bias": bias, "w2": w2p,
            "fin": fin, "fout": fout, "fin_p": fin_p, "fout_p": fout_p,
            "channel_equal": channel_equal}


# ------------------------------ Pallas wrappers ------------------------------ #

def resblock_padded(x_p, prep, *, batch_tile=None):
    """Apply one ResBlock to an already padded (b_p, fin_p) input.

    Returns (b_p, fout_p); padded feature lanes are exactly zero, so outputs can be
    chained directly into the next block without slicing / re-padding.
    """
    b_p, fin_p = x_p.shape
    assert fin_p == prep["fin_p"]
    fout_p = prep["fout_p"]
    channel_equal = prep["channel_equal"]
    k_comb = prep["w2"].shape[0]          # fout_p (identity) or fout_p + fin_p (proj.)

    if batch_tile is None:
        batch_tile = b_p if b_p <= 512 else 512
    assert b_p % batch_tile == 0
    grid = (b_p // batch_tile,)

    # Advisory cost + VMEM budget (headroom, capped at 64 MiB so it is valid on v7x).
    flops = 2 * b_p * fout_p * (fin_p + k_comb) + 6 * b_p * (fin_p + 2 * fout_p)
    bytes_accessed = int(x_p.size * 4 + b_p * fout_p * 4
                         + prep["w1"].size * 2 + prep["w2"].size * 2
                         + (prep["sb1"].size + prep["bias"].size) * 4)
    block_bytes = (batch_tile * (fin_p + fout_p) * 4
                   + prep["w1"].size * 2 + prep["w2"].size * 2
                   + (prep["sb1"].size + prep["bias"].size) * 4)
    interm_bytes = 4 * batch_tile * (2 * fin_p + 3 * fout_p + k_comb)
    vmem_limit = int(min(64 * 1024 * 1024,
                         max(16 * 1024 * 1024,
                             2 * block_bytes + interm_bytes + (4 << 20))))

    return pl.pallas_call(
        functools.partial(_resblock_kernel, channel_equal=channel_equal),
        out_shape=jax.ShapeDtypeStruct((b_p, fout_p), jnp.float32),
        grid=grid,
        in_specs=[
            pl.BlockSpec((batch_tile, fin_p), lambda i: (i, 0)),   # x (batch-tiled)
            pl.BlockSpec((2, fin_p), lambda i: (0, 0)),            # packed [s1; b1]
            pl.BlockSpec((fin_p, fout_p), lambda i: (0, 0)),       # w1 (BN2-folded, bf16)
            pl.BlockSpec((2, fout_p), lambda i: (0, 0)),           # packed [fb1'; fb2']
            pl.BlockSpec((k_comb, fout_p), lambda i: (0, 0)),      # w2 or [w2; wsc] (bf16)
        ],
        out_specs=pl.BlockSpec((batch_tile, fout_p), lambda i: (i, 0)),
        compiler_params=pltpu.CompilerParams(
            dimension_semantics=("parallel",),
            vmem_limit_bytes=vmem_limit),
        cost_estimate=pl.CostEstimate(flops=flops, transcendentals=0,
                                      bytes_accessed=bytes_accessed),
    )(x_p, prep["sb1"], prep["w1"], prep["bias"], prep["w2"])


def resblock(x, prep, *, batch_tile=256):
    """Apply one ResBlock to x of shape (B, Fin); returns (B, Fout)."""
    B, fin = x.shape
    assert fin == prep["fin"]
    tile = _round_up(min(batch_tile, _round_up(B, 8)), 8)
    b_p = _round_up(B, tile)
    x_p = jnp.pad(x.astype(jnp.float32), ((0, b_p - B), (0, prep["fin_p"] - fin)))
    out_p = resblock_padded(x_p, prep, batch_tile=tile)
    return out_p[:B, :prep["fout"]]


# --------------------------- params & pure-JAX reference -------------------- #

def init_resblock_params(key, fin, fout, eps=1e-5):
    ks = jax.random.split(key, 14)
    g1 = 1.0 + 0.1 * jax.random.normal(ks[0], (fin,), jnp.float32)
    be1 = 0.1 * jax.random.normal(ks[1], (fin,), jnp.float32)
    m1 = 0.1 * jax.random.normal(ks[2], (fin,), jnp.float32)
    v1 = 0.5 + jnp.abs(jax.random.normal(ks[3], (fin,), jnp.float32))
    g2 = 1.0 + 0.1 * jax.random.normal(ks[4], (fout,), jnp.float32)
    be2 = 0.1 * jax.random.normal(ks[5], (fout,), jnp.float32)
    m2 = 0.1 * jax.random.normal(ks[6], (fout,), jnp.float32)
    v2 = 0.5 + jnp.abs(jax.random.normal(ks[7], (fout,), jnp.float32))
    s1 = g1 / jnp.sqrt(v1 + eps)
    s2 = g2 / jnp.sqrt(v2 + eps)
    lim1 = float(np.sqrt(6.0 / fin))    # kaiming_uniform-style fan-in bound
    lim2 = float(np.sqrt(6.0 / fout))
    p = {
        "s1": s1, "b1": be1 - m1 * s1,
        "s2": s2, "b2": be2 - m2 * s2,
        # Linear weights stored pre-transposed to (in, out) for x @ W.
        "w1": jax.random.uniform(ks[8], (fin, fout), jnp.float32, -lim1, lim1),
        "fb1": 0.1 * jax.random.normal(ks[9], (fout,), jnp.float32),
        "w2": jax.random.uniform(ks[10], (fout, fout), jnp.float32, -lim2, lim2),
        "fb2": 0.1 * jax.random.normal(ks[11], (fout,), jnp.float32),
    }
    if fin != fout:
        p["wsc"] = jax.random.uniform(ks[12], (fin, fout), jnp.float32, -lim1, lim1)
        p["bsc"] = 0.1 * jax.random.normal(ks[13], (fout,), jnp.float32)
    return p


def ref_resblock(x, p):
    hp = jax.lax.Precision.HIGHEST
    a1 = jnp.maximum(x * p["s1"] + p["b1"], 0.0)
    h = jnp.dot(a1, p["w1"], precision=hp) + p["fb1"]
    a2 = jnp.maximum(h * p["s2"] + p["b2"], 0.0)
    out = jnp.dot(a2, p["w2"], precision=hp) + p["fb2"]
    sc = (jnp.dot(a1, p["wsc"], precision=hp) + p["bsc"]) if "wsc" in p else a1
    return out + sc


# ----------------------------------- main ----------------------------------- #

if __name__ == "__main__":
    key = jax.random.PRNGKey(0)
    kx, kp1, kp2 = jax.random.split(key, 3)

    B, fin, fout = 16, 32, 64
    x = jax.random.normal(kx, (B, fin), jnp.float32)

    # Block 1: channels differ -> fused fc2 + shortcut-projection path.
    p1 = init_resblock_params(kp1, fin, fout)
    prep1 = prepare_resblock_params(p1)
    out1 = jax.block_until_ready(resblock(x, prep1))
    ref1 = ref_resblock(x, p1)
    np.testing.assert_allclose(np.asarray(out1), np.asarray(ref1), rtol=3e-2, atol=3e-2)

    # Block 2: channels equal -> identity residual, chained on block 1's PADDED
    # output (no slice / re-pad between blocks: padded lanes are exactly zero).
    p2 = init_resblock_params(kp2, fout, fout)
    prep2 = prepare_resblock_params(p2)
    x_p = jnp.pad(x, ((0, 0), (0, prep1["fin_p"] - fin)))
    out1_p = resblock_padded(x_p, prep1)
    out2_p = jax.block_until_ready(resblock_padded(out1_p, prep2))
    ref2 = ref_resblock(ref1, p2)
    np.testing.assert_allclose(np.asarray(out2_p[:B, :fout]), np.asarray(ref2),
                               rtol=6e-2, atol=6e-2)

    print("KERNEL_OK")
</pallas_src>

<mosaic_0001>
module attributes {stable_mosaic.version = 11 : i64} {
  func.func @_resblock_kernel(%arg0: i32, %arg1: memref<16x128xf32, #tpu.memory_space<vmem>>, %arg2: memref<2x128xf32, #tpu.memory_space<vmem>>, %arg3: memref<128x128xbf16, #tpu.memory_space<vmem>>, %arg4: memref<2x128xf32, #tpu.memory_space<vmem>>, %arg5: memref<256x128xbf16, #tpu.memory_space<vmem>>, %arg6: memref<16x128xf32, #tpu.memory_space<vmem>>) attributes {dimension_semantics = [#tpu.dimension_semantics<parallel>], iteration_bounds = array<i64: 1>, scalar_prefetch = 0 : i64, scratch_operands = 0 : i64, tpu.core_type = #tpu.core_type<tc>, window_params = [{transform_indices = @transform_0, window_bounds = array<i64: 16, 128>}, {pipeline_mode = #tpu.pipeline_mode<synchronous>, transform_indices = @transform_1, window_bounds = array<i64: 2, 128>}, {pipeline_mode = #tpu.pipeline_mode<synchronous>, transform_indices = @transform_2, window_bounds = array<i64: 128, 128>}, {pipeline_mode = #tpu.pipeline_mode<synchronous>, transform_indices = @transform_3, window_bounds = array<i64: 2, 128>}, {pipeline_mode = #tpu.pipeline_mode<synchronous>, transform_indices = @transform_4, window_bounds = array<i64: 256, 128>}, {transform_indices = @transform_5, window_bounds = array<i64: 16, 128>}]} {
    %c0 = arith.constant 0 : index
    %c0_0 = arith.constant 0 : index
    %0 = vector.load %arg1[%c0, %c0_0] : memref<16x128xf32, #tpu.memory_space<vmem>>, vector<16x128xf32>
    %c0_1 = arith.constant 0 : index
    %c0_2 = arith.constant 0 : index
    %1 = vector.load %arg2[%c0_1, %c0_2] : memref<2x128xf32, #tpu.memory_space<vmem>>, vector<1x128xf32>
    %2 = vector.broadcast %1 : vector<1x128xf32> to vector<16x128xf32>
    %3 = arith.mulf %0, %2 : vector<16x128xf32>
    %c1 = arith.constant 1 : index
    %c0_3 = arith.constant 0 : index
    %4 = vector.load %arg2[%c1, %c0_3] : memref<2x128xf32, #tpu.memory_space<vmem>>, vector<1x128xf32>
    %5 = vector.broadcast %4 : vector<1x128xf32> to vector<16x128xf32>
    %6 = arith.addf %3, %5 : vector<16x128xf32>
    %cst = arith.constant 0.000000e+00 : f32
    %7 = vector.broadcast %cst : f32 to vector<16x128xf32>
    %8 = arith.maximumf %6, %7 : vector<16x128xf32>
    %9 = arith.truncf %8 : vector<16x128xf32> to vector<16x128xbf16>
    %c0_4 = arith.constant 0 : index
    %c0_5 = arith.constant 0 : index
    %10 = vector.load %arg3[%c0_4, %c0_5] : memref<128x128xbf16, #tpu.memory_space<vmem>>, vector<128x128xbf16>
    %cst_6 = arith.constant dense<0.000000e+00> : vector<16x128xf32>
    %11 = tpu.matmul %9, %10, %cst_6 {dimension_numbers = #tpu.dot_dimension_numbers<[1], [0], [0], [1], [0, 0, 1, 1], [], []>} : vector<16x128xbf16>, vector<128x128xbf16>, vector<16x128xf32> -> vector<16x128xf32>
    %c0_7 = arith.constant 0 : index
    %c0_8 = arith.constant 0 : index
    %12 = vector.load %arg4[%c0_7, %c0_8] : memref<2x128xf32, #tpu.memory_space<vmem>>, vector<1x128xf32>
    %13 = vector.broadcast %12 : vector<1x128xf32> to vector<16x128xf32>
    %14 = arith.addf %11, %13 : vector<16x128xf32>
    %cst_9 = arith.constant 0.000000e+00 : f32
    %15 = vector.broadcast %cst_9 : f32 to vector<16x128xf32>
    %16 = arith.maximumf %14, %15 : vector<16x128xf32>
    %17 = arith.truncf %16 : vector<16x128xf32> to vector<16x128xbf16>
    %18 = tpu.concatenate %17, %9 in 1 : vector<16x128xbf16>, vector<16x128xbf16> -> vector<16x256xbf16>
    %c0_10 = arith.constant 0 : index
    %c0_11 = arith.constant 0 : index
    %19 = vector.load %arg5[%c0_10, %c0_11] : memref<256x128xbf16, #tpu.memory_space<vmem>>, vector<256x128xbf16>
    %cst_12 = arith.constant dense<0.000000e+00> : vector<16x128xf32>
    %20 = tpu.matmul %18, %19, %cst_12 {dimension_numbers = #tpu.dot_dimension_numbers<[1], [0], [0], [1], [0, 0, 1, 1], [], []>} : vector<16x256xbf16>, vector<256x128xbf16>, vector<16x128xf32> -> vector<16x128xf32>
    %c1_13 = arith.constant 1 : index
    %c0_14 = arith.constant 0 : index
    %21 = vector.load %arg4[%c1_13, %c0_14] : memref<2x128xf32, #tpu.memory_space<vmem>>, vector<1x128xf32>
    %22 = vector.broadcast %21 : vector<1x128xf32> to vector<16x128xf32>
    %23 = arith.addf %20, %22 : vector<16x128xf32>
    %c0_15 = arith.constant 0 : index
    %c0_16 = arith.constant 0 : index
    %24 = vector.load %arg6[%c0_15, %c0_16] : memref<16x128xf32, #tpu.memory_space<vmem>>, vector<16x128xf32>
    tpu.vector_store %arg6[%c0_15, %c0_16], %23 {strides = array<i32>} : memref<16x128xf32, #tpu.memory_space<vmem>>, vector<16x128xf32>,
    return
  }
  func.func @transform_0(%arg0: i32) -> (i32, i32) {
    %c0_i32 = arith.constant 0 : i32
    %c0_i32_0 = arith.constant 0 : i32
    return %arg0, %c0_i32 : i32, i32
  }
  func.func @transform_1(%arg0: i32) -> (i32, i32) {
    %c0_i32 = arith.constant 0 : i32
    %c0_i32_0 = arith.constant 0 : i32
    %c0_i32_1 = arith.constant 0 : i32
    return %c0_i32, %c0_i32_0 : i32, i32
  }
  func.func @transform_2(%arg0: i32) -> (i32, i32) {
    %c0_i32 = arith.constant 0 : i32
    %c0_i32_0 = arith.constant 0 : i32
    %c0_i32_1 = arith.constant 0 : i32
    return %c0_i32, %c0_i32_0 : i32, i32
  }
  func.func @transform_3(%arg0: i32) -> (i32, i32) {
    %c0_i32 = arith.constant 0 : i32
    %c0_i32_0 = arith.constant 0 : i32
    %c0_i32_1 = arith.constant 0 : i32
    return %c0_i32, %c0_i32_0 : i32, i32
  }
  func.func @transform_4(%arg0: i32) -> (i32, i32) {
    %c0_i32 = arith.constant 0 : i32
    %c0_i32_0 = arith.constant 0 : i32
    %c0_i32_1 = arith.constant 0 : i32
    return %c0_i32, %c0_i32_0 : i32, i32
  }
  func.func @transform_5(%arg0: i32) -> (i32, i32) {
    %c0_i32 = arith.constant 0 : i32
    %c0_i32_0 = arith.constant 0 : i32
    return %arg0, %c0_i32 : i32, i32
  }
}

</mosaic_0001>

<llo_original>
// kernel: tpu_custom_call.1
$region0: #{tpu_custom_call.1}
  #allocation0 [shape = 'u32[]', space=smem, size = 0x4, offset = 0x4, fixed_abs, tag = 'smem constant byte address 0x4 - core index']
  #allocation1 [shape = 'u32[72,128]{1,0:T(1,128)}', space=vmem, size = 0x9000, scoped, tag = 'internal scratch']
  %s0 = inlined_call_operand.hbm [shape: f32[16,128], index: 0, kind: input, shape index: {}]
  %s1 = inlined_call_operand.hbm [shape: f32[2,128], index: 1, kind: input, shape index: {}]
  %s2 = inlined_call_operand.hbm [shape: bf16[128,128], index: 2, kind: input, shape index: {}]
  %s3 = inlined_call_operand.vmem [shape: f32[2,128], index: 3, kind: input, shape index: {}]
  %s4 = inlined_call_operand.hbm [shape: bf16[256,128], index: 4, kind: input, shape index: {}]
  %s5 = inlined_call_operand.hbm [shape: f32[16,128], index: 5, kind: output, shape index: {}]
  %s6 = sld [smem:[#allocation0]]
  $region46: #{tpu_custom_call.1} parent=0
    _
  %s8 = ssub.s32 1, %s6
  %s9 = scalar_select 0, %s8, %s6
  $region1: #{tpu_custom_call.1} parent=0
    #allocation2 [shape = 'u8[8192]{0}', space=vmem, size = 0x2000, scoped, tag = 'input window, operand 0, single buffered']
    #allocation3 [shape = 's32[1]{0}', space=sflag, size = 0x4, scoped, tag = 'scoped memory for tpu_custom_call.1']
    #allocation4 [shape = 's32[1]{0}', space=sflag, size = 0x4, scoped, tag = 'scoped memory for tpu_custom_call.1']
    #allocation5 [shape = 'u8[1024]{0}', space=vmem, size = 0x400, scoped, tag = 'input window, operand 1, single buffered']
    #allocation6 [shape = 's32[1]{0}', space=sflag, size = 0x4, scoped, tag = 'scoped memory for tpu_custom_call.1']
    #allocation7 [shape = 'u8[32768]{0}', space=vmem, size = 0x8000, scoped, tag = 'input window, operand 2, single buffered']
    #allocation8 [shape = 'u8[65536]{0}', space=vmem, size = 0x10000, scoped, tag = 'input window, operand 4, single buffered']
    #allocation9 [shape = 's32[1]{0}', space=sflag, size = 0x4, scoped, tag = 'scoped memory for tpu_custom_call.1']
    #allocation10 [shape = 'u8[8192]{0}', space=vmem, size = 0x2000, scoped, tag = 'output window, operand 0, single buffered']
    %10 = vsyncpa [#allocation3], 0
    %11 = vsyncpa [#allocation6], 0
    %12 = vsyncpa [#allocation9], 0
    %13 = vsyncpa [#allocation4], 0
    // Predicated region
    $region2: #{tpu_custom_call.1} parent=1 // pred_check
      _
    $region3: #{tpu_custom_call.1} parent=1 // pred_check_branch
      %15 = sbr.rel (0) target = $region5
    $region4: #{tpu_custom_call.1} parent=1 // pred_region
      %17 = vsyncadd [#allocation3], 0
      %s18 = sshll.u32 %s0, 4
      %s19 = int_to_ptr.hbm [resolvable:$true] %s18
      %s20 = sshll.u32 [#allocation2], 4
      %s21 = int_to_ptr.vmem [resolvable:$true] %s20
      %26 = dma.hbm_to_vmem [thread:$0]  %s19, 256, %s21, [#allocation3], 128, 128, 8
    $region5: #{tpu_custom_call.1} parent=1 // pred_fallthru
      _
    // Predicated region
    $region6: #{tpu_custom_call.1} parent=1 // pred_check
      _
    $region7: #{tpu_custom_call.1} parent=1 // pred_check_branch
      %28 = sbr.rel (0) target = $region9
    $region8: #{tpu_custom_call.1} parent=1 // pred_region
      %30 = vsyncadd [#allocation6], 0
      %s32 = sshll.u32 %s1, 4
      %s33 = int_to_ptr.hbm [resolvable:$true] %s32
      %s34 = sshll.u32 [#allocation5], 4
      %s35 = int_to_ptr.vmem [resolvable:$true] %s34
      %37 = dma.hbm_to_vmem [thread:$0]  %s33, 32, %s35, [#allocation6]
    $region9: #{tpu_custom_call.1} parent=1 // pred_fallthru
      _
    // Predicated region
    $region10: #{tpu_custom_call.1} parent=1 // pred_check
      _
    $region11: #{tpu_custom_call.1} parent=1 // pred_check_branch
      %39 = sbr.rel (0) target = $region13
    $region12: #{tpu_custom_call.1} parent=1 // pred_region
      %41 = vsyncadd [#allocation6], 0
      %s42 = sshll.u32 %s2, 4
      %s43 = int_to_ptr.hbm [resolvable:$true] %s42
      %s44 = sshll.u32 [#allocation7], 4
      %s45 = int_to_ptr.vmem [resolvable:$true] %s44
      %50 = dma.hbm_to_vmem [thread:$0]  %s43, 1024, %s45, [#allocation6], 64, 64, 4
    $region13: #{tpu_custom_call.1} parent=1 // pred_fallthru
      _
    // Predicated region
    $region14: #{tpu_custom_call.1} parent=1 // pred_check
      _
    $region15: #{tpu_custom_call.1} parent=1 // pred_check_branch
      %52 = sbr.rel (0) target = $region17
    $region16: #{tpu_custom_call.1} parent=1 // pred_region
      _
    $region17: #{tpu_custom_call.1} parent=1 // pred_fallthru
      _
    // Predicated region
    $region18: #{tpu_custom_call.1} parent=1 // pred_check
      _
    $region19: #{tpu_custom_call.1} parent=1 // pred_check_branch
      %54 = sbr.rel (0) target = $region21
    $region20: #{tpu_custom_call.1} parent=1 // pred_region
      %56 = vsyncadd [#allocation9], 0
      %s57 = sshll.u32 %s4, 4
      %s58 = int_to_ptr.hbm [resolvable:$true] %s57
      %s59 = sshll.u32 [#allocation8], 4
      %s60 = int_to_ptr.vmem [resolvable:$true] %s59
      %65 = dma.hbm_to_vmem [thread:$0]  %s58, 2048, %s60, [#allocation9], 64, 64, 4
    $region21: #{tpu_custom_call.1} parent=1 // pred_fallthru
      _
    // Predicated region
    $region22: #{tpu_custom_call.1} parent=1 // pred_check
      _
    $region23: #{tpu_custom_call.1} parent=1 // pred_check_branch
      %67 = sbr.rel (0) target = $region25
    $region24: #{tpu_custom_call.1} parent=1 // pred_region
      %69 = dma.done [#allocation3], 256
    $region25: #{tpu_custom_call.1} parent=1 // pred_fallthru
      _
    // Predicated region
    $region26: #{tpu_custom_call.1} parent=1 // pred_check
      _
    $region27: #{tpu_custom_call.1} parent=1 // pred_check_branch
      %71 = sbr.rel (0) target = $region29
    $region28: #{tpu_custom_call.1} parent=1 // pred_region
      %73 = dma.done [#allocation6], 32
    $region29: #{tpu_custom_call.1} parent=1 // pred_fallthru
      _
    // Predicated region
    $region30: #{tpu_custom_call.1} parent=1 // pred_check
      _
    $region31: #{tpu_custom_call.1} parent=1 // pred_check_branch
      %75 = sbr.rel (0) target = $region33
    $region32: #{tpu_custom_call.1} parent=1 // pred_region
      %77 = dma.done [#allocation6], 1024
    $region33: #{tpu_custom_call.1} parent=1 // pred_fallthru
      _
    // Predicated region
    $region34: #{tpu_custom_call.1} parent=1 // pred_check
      _
    $region35: #{tpu_custom_call.1} parent=1 // pred_check_branch
      %79 = sbr.rel (0) target = $region37
    $region36: #{tpu_custom_call.1} parent=1 // pred_region
      %81 = dma.done [#allocation9], 2048
    $region37: #{tpu_custom_call.1} parent=1 // pred_fallthru
      _
    %v82 = vld [vmem:[#allocation2] sm:$0xff]
    %v83 = vld [vmem:[#allocation2 + $0x8] sm:$0xff]
    %v84 = vld [vmem:[#allocation5] sm:$0x1]
    %v85 = vperm.slane %v84, 0
    %v86 = vmul.f32 %v82, %v85
    %v87 = vmul.f32 %v83, %v85
    %v88 = vld [vmem:[#allocation5 + $0x1] sm:$0x1]
    %v89 = vperm.slane %v88, 0
    %v90 = vadd.f32 %v86, %v89
    %v91 = vadd.f32 %v87, %v89
    %v92 = vmax.f32 %v90, 0.0
    %v93 = vmax.f32 %v91, 0.0
    %v94 = vpack.c.bf16 %v92, %v92
    %v95 = vpack.c.bf16 %v93, %v93
    %v96 = vld [vmem:[#allocation7] sm:$0xf]
    %v97 = vld [vmem:[#allocation7 + $0x4] sm:$0xf]
    %v98 = vld [vmem:[#allocation7 + $0x8] sm:$0xf]
    %v99 = vld [vmem:[#allocation7 + $0xc] sm:$0xf]
    %v100 = vld [vmem:[#allocation7 + $0x10] sm:$0xf]
    %v101 = vld [vmem:[#allocation7 + $0x14] sm:$0xf]
    %v102 = vld [vmem:[#allocation7 + $0x18] sm:$0xf]
    %v103 = vld [vmem:[#allocation7 + $0x1c] sm:$0xf]
    %v104 = vld [vmem:[#allocation7 + $0x20] sm:$0xf]
    %v105 = vld [vmem:[#allocation7 + $0x24] sm:$0xf]
    %v106 = vld [vmem:[#allocation7 + $0x28] sm:$0xf]
    %v107 = vld [vmem:[#allocation7 + $0x2c] sm:$0xf]
    %v108 = vld [vmem:[#allocation7 + $0x30] sm:$0xf]
    %v109 = vld [vmem:[#allocation7 + $0x34] sm:$0xf]
    %v110 = vld [vmem:[#allocation7 + $0x38] sm:$0xf]
    %v111 = vld [vmem:[#allocation7 + $0x3c] sm:$0xf]
    %v112 = vld [vmem:[%s3] sm:$0x1]
    %v113 = vperm.slane %v112, 0
    %v116 = vunpack.c.l.b16 %v94
    %v117 = vunpack.c.l.b16 %v95
    %v118 = vpack.c.b16 %v117, %v116
    %v136 = vunpack.c.l.b16 %v96
    %v137 = vunpack.c.l.b16 %v97
    %v138 = vunpack.c.l.b16 %v98
    %v139 = vunpack.c.l.b16 %v99
    %v140 = vunpack.c.l.b16 %v100
    %v141 = vunpack.c.l.b16 %v101
    %v142 = vunpack.c.l.b16 %v102
    %v143 = vunpack.c.l.b16 %v103
    %v144 = vunpack.c.l.b16 %v104
    %v145 = vunpack.c.l.b16 %v105
    %v146 = vunpack.c.l.b16 %v106
    %v147 = vunpack.c.l.b16 %v107
    %v148 = vunpack.c.l.b16 %v108
    %v149 = vunpack.c.l.b16 %v109
    %v150 = vunpack.c.l.b16 %v110
    %v151 = vunpack.c.l.b16 %v111
    %v152 = vpack.c.b16 %v137, %v136
    %v153 = vpack.c.b16 %v139, %v138
    %v154 = vpack.c.b16 %v141, %v140
    %v155 = vpack.c.b16 %v143, %v142
    %v156 = vpack.c.b16 %v145, %v144
    %v157 = vpack.c.b16 %v147, %v146
    %v158 = vpack.c.b16 %v149, %v148
    %v159 = vpack.c.b16 %v151, %v150
    %168 = vmatpush.bf16.msra.mxu0 %v159
    %169 = vmatpush.bf16.msra.mxu0 %v158
    %170 = vmatpush.bf16.msra.mxu0 %v157
    %171 = vmatpush.bf16.msra.mxu0 %v156
    %172 = vmatpush.bf16.msra.mxu0 %v155
    %173 = vmatpush.bf16.msra.mxu0 %v154
    %174 = vmatpush.bf16.msra.mxu0 %v153
    %175 = vmatpush.bf16.msra.mxu0 %v152
    %176 = vmatmul.bf16.gmra.mxu0 %v118
    %v177 = vpop.f32.mrf.mxu0
    %v178 = vadd.f32 %v113, %v177
    %v179 = vpop.f32.mrf.mxu0
    %v180 = vadd.f32 %v113, %v179
    %181 = vdwg.mxu0
    %v182 = vmax.f32 %v178, 0.0
    %v183 = vmax.f32 %v180, 0.0
    %v184 = vpack.c.bf16 %v182, %v182
    %v185 = vpack.c.bf16 %v183, %v183
    %v188 = vunpack.c.l.b16 %v184
    %v189 = vunpack.c.l.b16 %v185
    %v190 = vpack.c.b16 %v189, %v188
    %v192 = vld [vmem:[#allocation8] sm:$0xf]
    %v193 = vld [vmem:[#allocation8 + $0x4] sm:$0xf]
    %v194 = vld [vmem:[#allocation8 + $0x8] sm:$0xf]
    %v195 = vld [vmem:[#allocation8 + $0xc] sm:$0xf]
    %v196 = vld [vmem:[#allocation8 + $0x10] sm:$0xf]
    %v197 = vld [vmem:[#allocation8 + $0x14] sm:$0xf]
    %v198 = vld [vmem:[#allocation8 + $0x18] sm:$0xf]
    %v199 = vld [vmem:[#allocation8 + $0x1c] sm:$0xf]
    %v200 = vld [vmem:[#allocation8 + $0x20] sm:$0xf]
    %v201 = vld [vmem:[#allocation8 + $0x24] sm:$0xf]
    %v202 = vld [vmem:[#allocation8 + $0x28] sm:$0xf]
    %v203 = vld [vmem:[#allocation8 + $0x2c] sm:$0xf]
    %v204 = vld [vmem:[#allocation8 + $0x30] sm:$0xf]
    %v205 = vld [vmem:[#allocation8 + $0x34] sm:$0xf]
    %v206 = vld [vmem:[#allocation8 + $0x38] sm:$0xf]
    %v207 = vld [vmem:[#allocation8 + $0x3c] sm:$0xf]
    %v208 = vld [vmem:[#allocation8 + $0x40] sm:$0xf]
    %v209 = vld [vmem:[#allocation8 + $0x44] sm:$0xf]
    %v210 = vld [vmem:[#allocation8 + $0x48] sm:$0xf]
    %v211 = vld [vmem:[#allocation8 + $0x4c] sm:$0xf]
    %v212 = vld [vmem:[#allocation8 + $0x50] sm:$0xf]
    %v213 = vld [vmem:[#allocation8 + $0x54] sm:$0xf]
    %v214 = vld [vmem:[#allocation8 + $0x58] sm:$0xf]
    %v215 = vld [vmem:[#allocation8 + $0x5c] sm:$0xf]
    %v216 = vld [vmem:[#allocation8 + $0x60] sm:$0xf]
    %v217 = vld [vmem:[#allocation8 + $0x64] sm:$0xf]
    %v218 = vld [vmem:[#allocation8 + $0x68] sm:$0xf]
    %v219 = vld [vmem:[#allocation8 + $0x6c] sm:$0xf]
    %v220 = vld [vmem:[#allocation8 + $0x70] sm:$0xf]
    %v221 = vld [vmem:[#allocation8 + $0x74] sm:$0xf]
    %v222 = vld [vmem:[#allocation8 + $0x78] sm:$0xf]
    %v223 = vld [vmem:[#allocation8 + $0x7c] sm:$0xf]
    %v224 = vld [vmem:[%s3 + $0x1] sm:$0x1]
    %v225 = vperm.slane %v224, 0
    %v258 = vunpack.c.l.b16 %v192
    %v259 = vunpack.c.l.b16 %v193
    %v260 = vunpack.c.l.b16 %v194
    %v261 = vunpack.c.l.b16 %v195
    %v262 = vunpack.c.l.b16 %v196
    %v263 = vunpack.c.l.b16 %v197
    %v264 = vunpack.c.l.b16 %v198
    %v265 = vunpack.c.l.b16 %v199
    %v266 = vunpack.c.l.b16 %v200
    %v267 = vunpack.c.l.b16 %v201
    %v268 = vunpack.c.l.b16 %v202
    %v269 = vunpack.c.l.b16 %v203
    %v270 = vunpack.c.l.b16 %v204
    %v271 = vunpack.c.l.b16 %v205
    %v272 = vunpack.c.l.b16 %v206
    %v273 = vunpack.c.l.b16 %v207
    %v274 = vunpack.c.l.b16 %v208
    %v275 = vunpack.c.l.b16 %v209
    %v276 = vunpack.c.l.b16 %v210
    %v277 = vunpack.c.l.b16 %v211
    %v278 = vunpack.c.l.b16 %v212
    %v279 = vunpack.c.l.b16 %v213
    %v280 = vunpack.c.l.b16 %v214
    %v281 = vunpack.c.l.b16 %v215
    %v282 = vunpack.c.l.b16 %v216
    %v283 = vunpack.c.l.b16 %v217
    %v284 = vunpack.c.l.b16 %v218
    %v285 = vunpack.c.l.b16 %v219
    %v286 = vunpack.c.l.b16 %v220
    %v287 = vunpack.c.l.b16 %v221
    %v288 = vunpack.c.l.b16 %v222
    %v289 = vunpack.c.l.b16 %v223
    %v290 = vpack.c.b16 %v259, %v258
    %v291 = vpack.c.b16 %v261, %v260
    %v292 = vpack.c.b16 %v263, %v262
    %v293 = vpack.c.b16 %v265, %v264
    %v294 = vpack.c.b16 %v267, %v266
    %v295 = vpack.c.b16 %v269, %v268
    %v296 = vpack.c.b16 %v271, %v270
    %v297 = vpack.c.b16 %v273, %v272
    %v298 = vpack.c.b16 %v275, %v274
    %v299 = vpack.c.b16 %v277, %v276
    %v300 = vpack.c.b16 %v279, %v278
    %v301 = vpack.c.b16 %v281, %v280
    %v302 = vpack.c.b16 %v283, %v282
    %v303 = vpack.c.b16 %v285, %v284
    %v304 = vpack.c.b16 %v287, %v286
    %v305 = vpack.c.b16 %v289, %v288
    %322 = vmatpush.bf16.msra.mxu0 %v297
    %323 = vmatpush.bf16.msra.mxu0 %v296
    %324 = vmatpush.bf16.msra.mxu0 %v295
    %325 = vmatpush.bf16.msra.mxu0 %v294
    %326 = vmatpush.bf16.msra.mxu0 %v293
    %327 = vmatpush.bf16.msra.mxu0 %v292
    %328 = vmatpush.bf16.msra.mxu0 %v291
    %329 = vmatpush.bf16.msra.mxu0 %v290
    %330 = vmatmul.bf16.gmra.mxu0 %v190
    %v331 = vpop.f32.mrf.mxu0
    %v332 = vadd.f32 %v225, %v331
    %v333 = vpop.f32.mrf.mxu0
    %v334 = vadd.f32 %v225, %v333
    %335 = vdwg.mxu0
    %336 = vmatpush.bf16.msra.mxu0 %v305
    %337 = vmatpush.bf16.msra.mxu0 %v304
    %338 = vmatpush.bf16.msra.mxu0 %v303
    %339 = vmatpush.bf16.msra.mxu0 %v302
    %340 = vmatpush.bf16.msra.mxu0 %v301
    %341 = vmatpush.bf16.msra.mxu0 %v300
    %342 = vmatpush.bf16.msra.mxu0 %v299
    %343 = vmatpush.bf16.msra.mxu0 %v298
    %344 = vmatmul.bf16.gmra.mxu0 %v118
    %v345 = vpop.f32.mrf.mxu0
    %v346 = vadd.f32 %v332, %v345
    %v347 = vpop.f32.mrf.mxu0
    %v348 = vadd.f32 %v334, %v347
    %349 = vdwg.mxu0
    %350 = vst [vmem:[#allocation10] sm:$0xff] %v346
    %351 = vst [vmem:[#allocation10 + $0x8] sm:$0xff] %v348
    // Predicated region
    $region38: #{tpu_custom_call.1} parent=1 // pred_check
      _
    $region39: #{tpu_custom_call.1} parent=1 // pred_check_branch
      %353 = sbr.rel (0) target = $region41
    $region40: #{tpu_custom_call.1} parent=1 // pred_region
      %355 = vsyncadd [#allocation4], 0
      %s356 = sshll.u32 [#allocation10], 4
      %s357 = int_to_ptr.vmem [resolvable:$true] %s356
      %s358 = sshll.u32 %s5, 4
      %s359 = int_to_ptr.hbm [resolvable:$true] %s358
      %364 = dma.vmem_to_hbm [thread:$0]  %s357, 256, %s359, [#allocation4], 128, 128, 8
    $region41: #{tpu_custom_call.1} parent=1 // pred_fallthru
      _
    // Predicated region
    $region42: #{tpu_custom_call.1} parent=1 // pred_check
      _
    $region43: #{tpu_custom_call.1} parent=1 // pred_check_branch
      %366 = sbr.rel (0) target = $region45
    $region44: #{tpu_custom_call.1} parent=1 // pred_region
      %368 = dma.done [#allocation4], 256
    $region45: #{tpu_custom_call.1} parent=1 // pred_fallthru
      _
    %369 = vsyncpa [#allocation3], 1
    %370 = vsyncpa [#allocation6], 1
    %371 = vsyncpa [#allocation9], 1
    %372 = vsyncpa [#allocation4], 1

</llo_original>
